<compile_context>
chip_gen: v7x
topology: tpu7x:2x2x1
jax: 0.10.0
libtpu: 0.0.40
codegen_flags: <defaults>
</compile_context>

<pallas_src>
import jax
import jax.numpy as jnp
from jax.experimental import pallas as pl
from jax.experimental.pallas import tpu as pltpu


def _mlp_kernel(x_ref, w_ref, b_ref, meaning_ref, language_ref, acc_ref):
    """One fused MXU pass per (m, k) tile: [tm, tk] @ [tk, 2E] -> f32 acc."""
    k = pl.program_id(1)

    @pl.when(k == 0)
    def _init():
        acc_ref[...] = jnp.zeros_like(acc_ref)

    acc_ref[...] += jnp.dot(
        x_ref[...], w_ref[...], preferred_element_type=jnp.float32
    )

    @pl.when(k == pl.num_programs(1) - 1)
    def _finalize():
        acc = acc_ref[...] + b_ref[...]          # f32 bias add (v5e-safe)
        e = meaning_ref.shape[-1]
        meaning_ref[...] = acc[:, :e].astype(meaning_ref.dtype)
        language_ref[...] = acc[:, e:].astype(language_ref.dtype)


def prepare_params(w_meaning, b_meaning, w_language, b_language,
                   *, compute_dtype=jnp.bfloat16):
    """One-time parameter prep (NOT per forward call).

    w_*: [E_out, E_in] (PyTorch nn.Linear layout), b_*: [E_out].
    Returns (w_cat [E_in, 2*E_out] in compute_dtype, b_cat [1, 2*E_out] f32),
    meaning columns first.
    """
    E = w_meaning.shape[1]
    w_cat = jnp.concatenate([w_meaning.T, w_language.T], axis=1).astype(compute_dtype)
    b_cat = jnp.concatenate([b_meaning, b_language]).astype(jnp.float32).reshape(1, 2 * E)
    return w_cat, b_cat


def _pick_k_tile(E):
    """K (contraction) tile: whole E when it fits comfortably, else an exact
    128-aligned divisor so no partial K block ever pollutes the accumulator."""
    if E <= 1024:
        return E
    for tk in (1024, 512, 256, 128):
        if E % tk == 0:
            return tk
    return E  # TODO(synk): ragged E > 1024 falls back to un-tiled K.


def mlp_forward(x, w_cat, b_cat, *, block_rows=512):
    """x: [B, E]; w_cat: [E, 2E]; b_cat: [1, 2E]. Returns (meaning, language)."""
    B, E = x.shape
    E2 = w_cat.shape[1]
    assert E2 == 2 * E and b_cat.shape == (1, E2)

    out_dtype = x.dtype
    compute_dtype = w_cat.dtype
    x_in = x.astype(compute_dtype)            # bf16 (or f32 if so prepared)

    in_itemsize = jnp.dtype(compute_dtype).itemsize
    out_itemsize = jnp.dtype(out_dtype).itemsize

    # ---- tile selection ---------------------------------------------------
    if B > block_rows:
        tm = max(8, (block_rows // 8) * 8)     # multiple of 8 (sublane)
    else:
        tm = B                                  # full-dim block: always legal
    tk = _pick_k_tile(E)
    num_k = E // tk

    def vmem_estimate(tm_):
        w_bufs = 1 if num_k == 1 else 2         # single-buffer invariant weight
        return (w_bufs * tk * E2 * in_itemsize       # fused weight
                + 2 * tm_ * tk * in_itemsize         # x (double buffered)
                + E2 * 4                              # bias (f32)
                + 2 * 2 * tm_ * E * out_itemsize      # 2 outputs, double buffered
                + tm_ * E2 * 4)                       # f32 accumulator scratch

    budget = 48 * 1024 * 1024                   # headroom under v7x's 64 MiB/TC
    while vmem_estimate(tm) > budget and tm > 8 and tm % 8 == 0:
        tm = max(8, tm // 2)

    num_m = pl.cdiv(B, tm)
    vmem_limit = int(min(64 * 1024 * 1024,
                         max(32 * 1024 * 1024, int(vmem_estimate(tm) * 1.5))))

    cost = pl.CostEstimate(
        flops=2 * B * E2 * E,
        transcendentals=0,
        bytes_accessed=(B * E * in_itemsize + E * E2 * in_itemsize
                        + E2 * 4 + 2 * B * E * out_itemsize),
    )

    def run(single_buffer_invariants):
        def spec(shape, index_map, invariant):
            if single_buffer_invariants and invariant:
                return pl.BlockSpec(shape, index_map, pipeline_mode=pl.Buffered(1))
            return pl.BlockSpec(shape, index_map)

        in_specs = [
            spec((tm, tk), lambda i, k: (i, k), invariant=False),          # x
            spec((tk, E2), lambda i, k: (k, 0), invariant=(num_k == 1)),   # W
            spec((1, E2), lambda i, k: (0, 0), invariant=True),            # b
        ]
        out_specs = (
            pl.BlockSpec((tm, E), lambda i, k: (i, 0)),                    # meaning
            pl.BlockSpec((tm, E), lambda i, k: (i, 0)),                    # language
        )
        return pl.pallas_call(
            _mlp_kernel,
            out_shape=(jax.ShapeDtypeStruct((B, E), out_dtype),
                       jax.ShapeDtypeStruct((B, E), out_dtype)),
            grid=(num_m, num_k),
            in_specs=in_specs,
            out_specs=out_specs,
            scratch_shapes=[pltpu.VMEM((tm, E2), jnp.float32)],
            compiler_params=pltpu.CompilerParams(
                dimension_semantics=("parallel", "arbitrary"),
                vmem_limit_bytes=vmem_limit,
            ),
            cost_estimate=cost,
        )(x_in, w_cat, b_cat)

    try:
        meaning, language = run(True)
    except Exception:
        # pl.Buffered(1) single-buffering is a pure VMEM optimization; fall
        # back to default double-buffering if this JAX version rejects it.
        meaning, language = run(False)
    return meaning, language


def _ref_forward(x, w_meaning, b_meaning, w_language, b_language):
    return (x @ w_meaning.T + b_meaning, x @ w_language.T + b_language)


if __name__ == "__main__":
    # ---- case 1: the module's small shape (B=8, E=32) ---------------------
    embedding_size = 32
    batch = 8
    n_languages = 4  # unused by forward; kept for parity with the module __init__

    key = jax.random.PRNGKey(0)
    kx, kwm, kbm, kwl, kbl = jax.random.split(key, 5)

    x = jax.random.normal(kx, (batch, embedding_size), dtype=jnp.float32)
    # PyTorch nn.Linear parameter shapes: weight [out, in], bias [out].
    w_meaning = jax.random.normal(kwm, (embedding_size, embedding_size), jnp.float32) * 0.1
    b_meaning = jax.random.normal(kbm, (embedding_size,), jnp.float32) * 0.1
    w_language = jax.random.normal(kwl, (embedding_size, embedding_size), jnp.float32) * 0.1
    b_language = jax.random.normal(kbl, (embedding_size,), jnp.float32) * 0.1

    w_cat, b_cat = prepare_params(w_meaning, b_meaning, w_language, b_language)
    w_cat, b_cat = jax.block_until_ready((w_cat, b_cat))

    meaning, language = mlp_forward(x, w_cat, b_cat)
    jax.block_until_ready((meaning, language))

    # Tight check vs a reference using the same bf16-input / f32-accum math.
    xb = x.astype(jnp.bfloat16)
    ref_bf = jnp.dot(xb, w_cat, preferred_element_type=jnp.float32) + b_cat
    assert jnp.allclose(meaning, ref_bf[:, :embedding_size], atol=1e-3, rtol=1e-3)
    assert jnp.allclose(language, ref_bf[:, embedding_size:], atol=1e-3, rtol=1e-3)

    # Loose check vs the exact-f32 PyTorch-equivalent reference (bf16 MXU inputs).
    ref_m, ref_l = _ref_forward(x, w_meaning, b_meaning, w_language, b_language)
    assert jnp.allclose(meaning, ref_m, atol=5e-2, rtol=5e-2)
    assert jnp.allclose(language, ref_l, atol=5e-2, rtol=5e-2)

    # ---- case 2: lane-dense outputs + batch tiling with a partial tail ----
    B2, E2_ = 300, 128
    k2 = jax.random.PRNGKey(1)
    kx2, kwm2, kbm2, kwl2, kbl2 = jax.random.split(k2, 5)
    x2 = jax.random.normal(kx2, (B2, E2_), jnp.float32)
    wm2 = jax.random.normal(kwm2, (E2_, E2_), jnp.float32) * 0.05
    bm2 = jax.random.normal(kbm2, (E2_,), jnp.float32) * 0.05
    wl2 = jax.random.normal(kwl2, (E2_, E2_), jnp.float32) * 0.05
    bl2 = jax.random.normal(kbl2, (E2_,), jnp.float32) * 0.05

    wc2, bc2 = prepare_params(wm2, bm2, wl2, bl2)
    m2, l2 = mlp_forward(x2, wc2, bc2, block_rows=128)
    jax.block_until_ready((m2, l2))

    r_m2, r_l2 = _ref_forward(x2, wm2, bm2, wl2, bl2)
    assert jnp.allclose(m2, r_m2, atol=5e-2, rtol=5e-2)
    assert jnp.allclose(l2, r_l2, atol=5e-2, rtol=5e-2)

    print("KERNEL_OK")
</pallas_src>

<mosaic_0001>
module attributes {stable_mosaic.version = 11 : i64} {
  func.func @_mlp_kernel(%arg0: i32, %arg1: i32, %arg2: memref<8x32xbf16, #tpu.memory_space<vmem>>, %arg3: memref<32x64xbf16, #tpu.memory_space<vmem>>, %arg4: memref<1x64xf32, #tpu.memory_space<vmem>>, %arg5: memref<8x32xf32, #tpu.memory_space<vmem>>, %arg6: memref<8x32xf32, #tpu.memory_space<vmem>>, %arg7: memref<8x64xf32, #tpu.memory_space<vmem>>) attributes {dimension_semantics = [#tpu.dimension_semantics<parallel>, #tpu.dimension_semantics<arbitrary>], iteration_bounds = array<i64: 1, 1>, scalar_prefetch = 0 : i64, scratch_operands = 1 : i64, tpu.core_type = #tpu.core_type<tc>, window_params = [{transform_indices = @transform_0, window_bounds = array<i64: 8, 32>}, {pipeline_mode = #tpu.pipeline_mode<synchronous>, transform_indices = @transform_1, window_bounds = array<i64: 32, 64>}, {pipeline_mode = #tpu.pipeline_mode<synchronous>, transform_indices = @transform_2, window_bounds = array<i64: 1, 64>}, {transform_indices = @transform_3, window_bounds = array<i64: 8, 32>}, {transform_indices = @transform_4, window_bounds = array<i64: 8, 32>}]} {
    %c0_i32 = arith.constant 0 : i32
    %0 = arith.cmpi eq, %arg1, %c0_i32 : i32
    %1 = arith.extui %0 : i1 to i32
    %c0_i32_0 = arith.constant 0 : i32
    %2 = arith.cmpi ne, %1, %c0_i32_0 : i32
    scf.if %2 {
      %cst_10 = arith.constant 0.000000e+00 : f32
      %12 = vector.broadcast %cst_10 : f32 to vector<8x64xf32>
      %c0_11 = arith.constant 0 : index
      %c0_12 = arith.constant 0 : index
      %13 = vector.load %arg7[%c0_11, %c0_12] : memref<8x64xf32, #tpu.memory_space<vmem>>, vector<8x64xf32>
      tpu.vector_store %arg7[%c0_11, %c0_12], %12 {strides = array<i32>} : memref<8x64xf32, #tpu.memory_space<vmem>>, vector<8x64xf32>,
    } else {
    }
    %c0 = arith.constant 0 : index
    %c0_1 = arith.constant 0 : index
    %3 = vector.load %arg7[%c0, %c0_1] : memref<8x64xf32, #tpu.memory_space<vmem>>, vector<8x64xf32>
    %c0_2 = arith.constant 0 : index
    %c0_3 = arith.constant 0 : index
    %4 = vector.load %arg2[%c0_2, %c0_3] : memref<8x32xbf16, #tpu.memory_space<vmem>>, vector<8x32xbf16>
    %c0_4 = arith.constant 0 : index
    %c0_5 = arith.constant 0 : index
    %5 = vector.load %arg3[%c0_4, %c0_5] : memref<32x64xbf16, #tpu.memory_space<vmem>>, vector<32x64xbf16>
    %cst = arith.constant dense<0.000000e+00> : vector<8x64xf32>
    %6 = tpu.matmul %4, %5, %cst {dimension_numbers = #tpu.dot_dimension_numbers<[1], [0], [0], [1], [0, 0, 1, 1], [], []>} : vector<8x32xbf16>, vector<32x64xbf16>, vector<8x64xf32> -> vector<8x64xf32>
    %7 = arith.addf %3, %6 : vector<8x64xf32>
    %c0_6 = arith.constant 0 : index
    %c0_7 = arith.constant 0 : index
    %8 = vector.load %arg7[%c0_6, %c0_7] : memref<8x64xf32, #tpu.memory_space<vmem>>, vector<8x64xf32>
    tpu.vector_store %arg7[%c0_6, %c0_7], %7 {strides = array<i32>} : memref<8x64xf32, #tpu.memory_space<vmem>>, vector<8x64xf32>,
    %c0_i32_8 = arith.constant 0 : i32
    %9 = arith.cmpi eq, %arg1, %c0_i32_8 : i32
    %10 = arith.extui %9 : i1 to i32
    %c0_i32_9 = arith.constant 0 : i32
    %11 = arith.cmpi ne, %10, %c0_i32_9 : i32
    scf.if %11 {
      %c0_10 = arith.constant 0 : index
      %c0_11 = arith.constant 0 : index
      %12 = vector.load %arg7[%c0_10, %c0_11] : memref<8x64xf32, #tpu.memory_space<vmem>>, vector<8x64xf32>
      %c0_12 = arith.constant 0 : index
      %c0_13 = arith.constant 0 : index
      %13 = vector.load %arg4[%c0_12, %c0_13] : memref<1x64xf32, #tpu.memory_space<vmem>>, vector<1x64xf32>
      %14 = vector.broadcast %13 : vector<1x64xf32> to vector<8x64xf32>
      %15 = arith.addf %12, %14 : vector<8x64xf32>
      %16 = vector.extract_strided_slice %15 {offsets = [0, 0], sizes = [8, 32], strides = [1, 1]} : vector<8x64xf32> to vector<8x32xf32>
      %c0_14 = arith.constant 0 : index
      %c0_15 = arith.constant 0 : index
      %17 = vector.load %arg5[%c0_14, %c0_15] : memref<8x32xf32, #tpu.memory_space<vmem>>, vector<8x32xf32>
      tpu.vector_store %arg5[%c0_14, %c0_15], %16 {strides = array<i32>} : memref<8x32xf32, #tpu.memory_space<vmem>>, vector<8x32xf32>,
      %18 = vector.extract_strided_slice %15 {offsets = [0, 32], sizes = [8, 32], strides = [1, 1]} : vector<8x64xf32> to vector<8x32xf32>
      %c0_16 = arith.constant 0 : index
      %c0_17 = arith.constant 0 : index
      %19 = vector.load %arg6[%c0_16, %c0_17] : memref<8x32xf32, #tpu.memory_space<vmem>>, vector<8x32xf32>
      tpu.vector_store %arg6[%c0_16, %c0_17], %18 {strides = array<i32>} : memref<8x32xf32, #tpu.memory_space<vmem>>, vector<8x32xf32>,
    } else {
    }
    return
  }
  func.func @transform_0(%arg0: i32, %arg1: i32) -> (i32, i32) {
    %c0_i32 = arith.constant 0 : i32
    return %arg0, %arg1 : i32, i32
  }
  func.func @transform_1(%arg0: i32, %arg1: i32) -> (i32, i32) {
    %c0_i32 = arith.constant 0 : i32
    %c0_i32_0 = arith.constant 0 : i32
    return %arg1, %c0_i32 : i32, i32
  }
  func.func @transform_2(%arg0: i32, %arg1: i32) -> (i32, i32) {
    %c0_i32 = arith.constant 0 : i32
    %c0_i32_0 = arith.constant 0 : i32
    %c0_i32_1 = arith.constant 0 : i32
    return %c0_i32, %c0_i32_0 : i32, i32
  }
  func.func @transform_3(%arg0: i32, %arg1: i32) -> (i32, i32) {
    %c0_i32 = arith.constant 0 : i32
    %c0_i32_0 = arith.constant 0 : i32
    return %arg0, %c0_i32 : i32, i32
  }
  func.func @transform_4(%arg0: i32, %arg1: i32) -> (i32, i32) {
    %c0_i32 = arith.constant 0 : i32
    %c0_i32_0 = arith.constant 0 : i32
    return %arg0, %c0_i32 : i32, i32
  }
}

module attributes {stable_mosaic.version = 11 : i64} {
  func.func @_mlp_kernel(%arg0: i32, %arg1: i32, %arg2: memref<8x32xbf16, #tpu.memory_space<vmem>>, %arg3: memref<32x64xbf16, #tpu.memory_space<vmem>>, %arg4: memref<1x64xf32, #tpu.memory_space<vmem>>, %arg5: memref<8x32xf32, #tpu.memory_space<vmem>>, %arg6: memref<8x32xf32, #tpu.memory_space<vmem>>, %arg7: memref<8x64xf32, #tpu.memory_space<vmem>>) attributes {dimension_semantics = [#tpu.dimension_semantics<parallel>, #tpu.dimension_semantics<arbitrary>], iteration_bounds = array<i64: 1, 1>, scalar_prefetch = 0 : i64, scratch_operands = 1 : i64, tpu.core_type = #tpu.core_type<tc>, window_params = [{transform_indices = @transform_0, window_bounds = array<i64: 8, 32>}, {transform_indices = @transform_1, window_bounds = array<i64: 32, 64>}, {pipeline_mode = #tpu.pipeline_mode<synchronous>, transform_indices = @transform_2, window_bounds = array<i64: 1, 64>}, {transform_indices = @transform_3, window_bounds = array<i64: 8, 32>}, {transform_indices = @transform_4, window_bounds = array<i64: 8, 32>}]} {
    %c0_i32 = arith.constant 0 : i32
    %0 = arith.cmpi eq, %arg1, %c0_i32 : i32
    %1 = arith.extui %0 : i1 to i32
    %c0_i32_0 = arith.constant 0 : i32
    %2 = arith.cmpi ne, %1, %c0_i32_0 : i32
    scf.if %2 {
      %cst_10 = arith.constant 0.000000e+00 : f32
      %12 = vector.broadcast %cst_10 : f32 to vector<8x64xf32>
      %c0_11 = arith.constant 0 : index
      %c0_12 = arith.constant 0 : index
      %13 = vector.load %arg7[%c0_11, %c0_12] : memref<8x64xf32, #tpu.memory_space<vmem>>, vector<8x64xf32>
      tpu.vector_store %arg7[%c0_11, %c0_12], %12 {strides = array<i32>} : memref<8x64xf32, #tpu.memory_space<vmem>>, vector<8x64xf32>,
    } else {
    }
    %c0 = arith.constant 0 : index
    %c0_1 = arith.constant 0 : index
    %3 = vector.load %arg7[%c0, %c0_1] : memref<8x64xf32, #tpu.memory_space<vmem>>, vector<8x64xf32>
    %c0_2 = arith.constant 0 : index
    %c0_3 = arith.constant 0 : index
    %4 = vector.load %arg2[%c0_2, %c0_3] : memref<8x32xbf16, #tpu.memory_space<vmem>>, vector<8x32xbf16>
    %c0_4 = arith.constant 0 : index
    %c0_5 = arith.constant 0 : index
    %5 = vector.load %arg3[%c0_4, %c0_5] : memref<32x64xbf16, #tpu.memory_space<vmem>>, vector<32x64xbf16>
    %cst = arith.constant dense<0.000000e+00> : vector<8x64xf32>
    %6 = tpu.matmul %4, %5, %cst {dimension_numbers = #tpu.dot_dimension_numbers<[1], [0], [0], [1], [0, 0, 1, 1], [], []>} : vector<8x32xbf16>, vector<32x64xbf16>, vector<8x64xf32> -> vector<8x64xf32>
    %7 = arith.addf %3, %6 : vector<8x64xf32>
    %c0_6 = arith.constant 0 : index
    %c0_7 = arith.constant 0 : index
    %8 = vector.load %arg7[%c0_6, %c0_7] : memref<8x64xf32, #tpu.memory_space<vmem>>, vector<8x64xf32>
    tpu.vector_store %arg7[%c0_6, %c0_7], %7 {strides = array<i32>} : memref<8x64xf32, #tpu.memory_space<vmem>>, vector<8x64xf32>,
    %c0_i32_8 = arith.constant 0 : i32
    %9 = arith.cmpi eq, %arg1, %c0_i32_8 : i32
    %10 = arith.extui %9 : i1 to i32
    %c0_i32_9 = arith.constant 0 : i32
    %11 = arith.cmpi ne, %10, %c0_i32_9 : i32
    scf.if %11 {
      %c0_10 = arith.constant 0 : index
      %c0_11 = arith.constant 0 : index
      %12 = vector.load %arg7[%c0_10, %c0_11] : memref<8x64xf32, #tpu.memory_space<vmem>>, vector<8x64xf32>
      %c0_12 = arith.constant 0 : index
      %c0_13 = arith.constant 0 : index
      %13 = vector.load %arg4[%c0_12, %c0_13] : memref<1x64xf32, #tpu.memory_space<vmem>>, vector<1x64xf32>
      %14 = vector.broadcast %13 : vector<1x64xf32> to vector<8x64xf32>
      %15 = arith.addf %12, %14 : vector<8x64xf32>
      %16 = vector.extract_strided_slice %15 {offsets = [0, 0], sizes = [8, 32], strides = [1, 1]} : vector<8x64xf32> to vector<8x32xf32>
      %c0_14 = arith.constant 0 : index
      %c0_15 = arith.constant 0 : index
      %17 = vector.load %arg5[%c0_14, %c0_15] : memref<8x32xf32, #tpu.memory_space<vmem>>, vector<8x32xf32>
      tpu.vector_store %arg5[%c0_14, %c0_15], %16 {strides = array<i32>} : memref<8x32xf32, #tpu.memory_space<vmem>>, vector<8x32xf32>,
      %18 = vector.extract_strided_slice %15 {offsets = [0, 32], sizes = [8, 32], strides = [1, 1]} : vector<8x64xf32> to vector<8x32xf32>
      %c0_16 = arith.constant 0 : index
      %c0_17 = arith.constant 0 : index
      %19 = vector.load %arg6[%c0_16, %c0_17] : memref<8x32xf32, #tpu.memory_space<vmem>>, vector<8x32xf32>
      tpu.vector_store %arg6[%c0_16, %c0_17], %18 {strides = array<i32>} : memref<8x32xf32, #tpu.memory_space<vmem>>, vector<8x32xf32>,
    } else {
    }
    return
  }
  func.func @transform_0(%arg0: i32, %arg1: i32) -> (i32, i32) {
    %c0_i32 = arith.constant 0 : i32
    return %arg0, %arg1 : i32, i32
  }
  func.func @transform_1(%arg0: i32, %arg1: i32) -> (i32, i32) {
    %c0_i32 = arith.constant 0 : i32
    %c0_i32_0 = arith.constant 0 : i32
    return %arg1, %c0_i32 : i32, i32
  }
  func.func @transform_2(%arg0: i32, %arg1: i32) -> (i32, i32) {
    %c0_i32 = arith.constant 0 : i32
    %c0_i32_0 = arith.constant 0 : i32
    %c0_i32_1 = arith.constant 0 : i32
    return %c0_i32, %c0_i32_0 : i32, i32
  }
  func.func @transform_3(%arg0: i32, %arg1: i32) -> (i32, i32) {
    %c0_i32 = arith.constant 0 : i32
    %c0_i32_0 = arith.constant 0 : i32
    return %arg0, %c0_i32 : i32, i32
  }
  func.func @transform_4(%arg0: i32, %arg1: i32) -> (i32, i32) {
    %c0_i32 = arith.constant 0 : i32
    %c0_i32_0 = arith.constant 0 : i32
    return %arg0, %c0_i32 : i32, i32
  }
}

</mosaic_0001>

<llo_original>
// kernel: tpu_custom_call.1
$region0: #{tpu_custom_call.1}
  #allocation0 [shape = 'u32[]', space=smem, size = 0x4, offset = 0x4, fixed_abs, tag = 'smem constant byte address 0x4 - core index']
  #allocation1 [shape = 'u32[144,128]{1,0:T(1,128)}', space=vmem, size = 0x12000, scoped, tag = 'internal scratch']
  #allocation2 [shape = 'f32[8,64]{1,0:T(8,128)}', space=vmem, size = 0x1000, scoped, tag = 'scratch operand']
  %s0 = inlined_call_operand.hbm [shape: bf16[8,32], index: 0, kind: input, shape index: {}]
  %s1 = inlined_call_operand.hbm [shape: bf16[32,64], index: 1, kind: input, shape index: {}]
  %s2 = inlined_call_operand.vmem [shape: f32[1,64], index: 2, kind: input, shape index: {}]
  %s3 = inlined_call_operand.hbm [shape: f32[8,32], index: 3, kind: output, shape index: {0}]
  %s4 = inlined_call_operand.hbm [shape: f32[8,32], index: 4, kind: output, shape index: {1}]
  %5 = xla_tuple %s3, %s4
  %s6 = sld [smem:[#allocation0]]
  $region46: #{tpu_custom_call.1} parent=0
    _
  %s8 = ssub.s32 1, %s6
  %s9 = scalar_select 0, %s8, %s6
  $region1: #{tpu_custom_call.1} parent=0
    #allocation3 [shape = 'u8[2048]{0}', space=vmem, size = 0x800, scoped, tag = 'input window, operand 0, single buffered']
    #allocation4 [shape = 's32[1]{0}', space=sflag, size = 0x4, scoped, tag = 'scoped memory for tpu_custom_call.1']
    #allocation5 [shape = 's32[1]{0}', space=sflag, size = 0x4, scoped, tag = 'scoped memory for tpu_custom_call.1']
    #allocation6 [shape = 'u8[8192]{0}', space=vmem, size = 0x2000, scoped, tag = 'input window, operand 1, single buffered']
    #allocation7 [shape = 's32[1]{0}', space=sflag, size = 0x4, scoped, tag = 'scoped memory for tpu_custom_call.1']
    #allocation8 [shape = 'u8[4096]{0}', space=vmem, size = 0x1000, scoped, tag = 'output window, operand 0, single buffered']
    #allocation9 [shape = 'u8[4096]{0}', space=vmem, size = 0x1000, scoped, tag = 'output window, operand 1, single buffered']
    #allocation10 [shape = 's32[1]{0}', space=sflag, size = 0x4, scoped, tag = 'scoped memory for tpu_custom_call.1']
    %10 = vsyncpa [#allocation4], 0
    %11 = vsyncpa [#allocation7], 0
    %12 = vsyncpa [#allocation5], 0
    %13 = vsyncpa [#allocation10], 0
    // Predicated region
    $region2: #{tpu_custom_call.1} parent=1 // pred_check
      _
    $region3: #{tpu_custom_call.1} parent=1 // pred_check_branch
      %15 = sbr.rel (0) target = $region5
    $region4: #{tpu_custom_call.1} parent=1 // pred_region
      %s17 = ssub.s32 64, 64
      %18 = vsyncadd [#allocation4], %s17
      %s20 = sshll.u32 [#allocation3], 4
      %s21 = int_to_ptr.vmem [resolvable:$true] %s20
      %23 = dma.hbm_to_vmem [thread:$0]  %s0, 64, %s21, [#allocation4]
    $region5: #{tpu_custom_call.1} parent=1 // pred_fallthru
      _
    // Predicated region
    $region6: #{tpu_custom_call.1} parent=1 // pred_check
      _
    $region7: #{tpu_custom_call.1} parent=1 // pred_check_branch
      %25 = sbr.rel (0) target = $region9
    $region8: #{tpu_custom_call.1} parent=1 // pred_region
      %s27 = ssub.s32 256, 256
      %28 = vsyncadd [#allocation7], %s27
      %s29 = sshll.u32 [#allocation6], 4
      %s30 = int_to_ptr.vmem [resolvable:$true] %s29
      %35 = dma.hbm_to_vmem [thread:$0]  %s1, 256, %s30, [#allocation7], 64, 64, 4
    $region9: #{tpu_custom_call.1} parent=1 // pred_fallthru
      _
    // Predicated region
    $region10: #{tpu_custom_call.1} parent=1 // pred_check
      _
    $region11: #{tpu_custom_call.1} parent=1 // pred_check_branch
      %37 = sbr.rel (0) target = $region13
    $region12: #{tpu_custom_call.1} parent=1 // pred_region
      _
    $region13: #{tpu_custom_call.1} parent=1 // pred_fallthru
      _
    // Predicated region
    $region14: #{tpu_custom_call.1} parent=1 // pred_check
      _
    $region15: #{tpu_custom_call.1} parent=1 // pred_check_branch
      %39 = sbr.rel (0) target = $region17
    $region16: #{tpu_custom_call.1} parent=1 // pred_region
      %40 = dma.done [#allocation4], 64
    $region17: #{tpu_custom_call.1} parent=1 // pred_fallthru
      _
    // Predicated region
    $region18: #{tpu_custom_call.1} parent=1 // pred_check
      _
    $region19: #{tpu_custom_call.1} parent=1 // pred_check_branch
      %42 = sbr.rel (0) target = $region21
    $region20: #{tpu_custom_call.1} parent=1 // pred_region
      %43 = dma.done [#allocation7], 256
    $region21: #{tpu_custom_call.1} parent=1 // pred_fallthru
      _
    %p45 = scmp.eq.s32.totalorder 0, 0
    // Predicated region
    $region22: #{tpu_custom_call.1} parent=1 // pred_check
      %p46 = pneg %p45
    $region23: #{tpu_custom_call.1} parent=1 // pred_check_branch
      %48 = sbr.rel (%p46) target = $region25
    $region24: #{tpu_custom_call.1} parent=1 // pred_region
      %vm49 = vcmask 523264
      %50 = vst.msk [vmem:[#allocation2] sm:$0xff] %vm49, 0.0
    $region25: #{tpu_custom_call.1} parent=1 // pred_fallthru
      _
    %v51 = vld [vmem:[#allocation2] sm:$0xff]
    %v52 = vld [vmem:[#allocation3] sm:$0xf]
    %v53 = vld [vmem:[#allocation6] sm:$0xf]
    %v54 = vld [vmem:[#allocation6 + $0x4] sm:$0xf]
    %v55 = vld [vmem:[#allocation6 + $0x8] sm:$0xf]
    %v56 = vld [vmem:[#allocation6 + $0xc] sm:$0xf]
    %v61 = vunpack.c.l.b16 %v53
    %v62 = vunpack.c.l.b16 %v54
    %v63 = vunpack.c.l.b16 %v55
    %v64 = vunpack.c.l.b16 %v56
    %v65 = vpack.c.b16 %v62, %v61
    %v66 = vpack.c.b16 %v64, %v63
    %vm69 = vcmask 261120
    %v71 = vsel %vm69, %v52, 0
    %73 = vmatprep.subr.bf16.mxu0 0
    %74 = vmatpush1.bf16.msra.mxu0 %v65
    %75 = vmatprep.subr.bf16.mxu0 0
    %76 = vmatpush1.bf16.msra.mxu0 %v66
    %77 = vmatprep.subr.bf16.mxu0 0
    %78 = vmatpush1.bf16.msra.mxu0 0
    %79 = vmatprep.subr.bf16.mxu0 0
    %80 = vmatpush1.bf16.msra.mxu0 0
    %81 = vmatprep.subr.bf16.mxu0 0
    %82 = vmatpush1.bf16.msra.mxu0 0
    %83 = vmatprep.subr.bf16.mxu0 0
    %84 = vmatpush1.bf16.msra.mxu0 0
    %85 = vmatprep.subr.bf16.mxu0 0
    %86 = vmatpush1.bf16.msra.mxu0 0
    %87 = vmatprep.subr.bf16.mxu0 0
    %88 = vmatpush1.bf16.msra.mxu0 0
    %89 = vmatprep.subr.bf16.mxu0 0
    %90 = vmatpush1.bf16.msra.mxu0 0
    %91 = vmatprep.subr.bf16.mxu0 0
    %92 = vmatpush1.bf16.msra.mxu0 0
    %93 = vmatprep.subr.bf16.mxu0 0
    %94 = vmatpush1.bf16.msra.mxu0 0
    %95 = vmatprep.subr.bf16.mxu0 0
    %96 = vmatpush1.bf16.msra.mxu0 0
    %97 = vmatprep.subr.bf16.mxu0 0
    %98 = vmatpush1.bf16.msra.mxu0 0
    %99 = vmatprep.subr.bf16.mxu0 0
    %100 = vmatpush1.bf16.msra.mxu0 0
    %101 = vmatprep.subr.bf16.mxu0 0
    %102 = vmatpush1.bf16.msra.mxu0 0
    %103 = vmatprep.subr.bf16.mxu0 0
    %104 = vmatpush1.bf16.msra.mxu0 0
    %105 = vmatprep.mubr.bf16.mxu0 0
    %106 = vmatmul.mubr.bf16.gmra.mrb[0].mxu0 %v71
    %v107 = vpop.f32.mrb[0].mxu0
    %v108 = vadd.f32 0.0, %v107
    %v109 = vpop.f32.mrb[0].mxu0
    %v110 = vpop.f32.mrb[0].mxu0
    %v111 = vpop.f32.mrb[0].mxu0
    %112 = vdwg.mxu0
    %v113 = vadd.f32 %v51, %v108
    %vm114 = vcmask 523264
    %115 = vst.msk [vmem:[#allocation2] sm:$0xff] %vm114, %v113
    // Predicated region
    $region26: #{tpu_custom_call.1} parent=1 // pred_check
      %p116 = pneg %p45
    $region27: #{tpu_custom_call.1} parent=1 // pred_check_branch
      %118 = sbr.rel (%p116) target = $region29
    $region28: #{tpu_custom_call.1} parent=1 // pred_region
      %v119 = vld [vmem:[#allocation2] sm:$0xff]
      %v120 = vld [vmem:[%s2] sm:$0x1]
      %v122 = vlaneseq
      %v123 = vshrl.u32 %v122, 7
      %v124 = vsub.s32 0, %v123
      %v125 = vrot.slane %v120, %v124
      %v127 = vadd.f32 %v119, %v125
      %128 = vst.msk [vmem:[#allocation8] sm:$0xff] %vm69, %v127
      %130 = vrot.lane.b32.xlu0 %v127, 96
      %v131 = vpop.permute.xlu0 %130
      %133 = vst.msk [vmem:[#allocation9] sm:$0xff] %vm69, %v131
    $region29: #{tpu_custom_call.1} parent=1 // pred_fallthru
      _
    // Predicated region
    $region30: #{tpu_custom_call.1} parent=1 // pred_check
      _
    $region31: #{tpu_custom_call.1} parent=1 // pred_check_branch
      %135 = sbr.rel (0) target = $region33
    $region32: #{tpu_custom_call.1} parent=1 // pred_region
      %s137 = ssub.s32 128, 128
      %138 = vsyncadd [#allocation5], %s137
      %s140 = sshll.u32 [#allocation8], 4
      %s141 = int_to_ptr.vmem [resolvable:$true] %s140
      %143 = dma.vmem_to_hbm [thread:$0]  %s141, 128, %s3, [#allocation5]
    $region33: #{tpu_custom_call.1} parent=1 // pred_fallthru
      _
    // Predicated region
    $region34: #{tpu_custom_call.1} parent=1 // pred_check
      _
    $region35: #{tpu_custom_call.1} parent=1 // pred_check_branch
      %145 = sbr.rel (0) target = $region37
    $region36: #{tpu_custom_call.1} parent=1 // pred_region
      %s147 = ssub.s32 128, 128
      %148 = vsyncadd [#allocation10], %s147
      %s150 = sshll.u32 [#allocation9], 4
      %s151 = int_to_ptr.vmem [resolvable:$true] %s150
      %153 = dma.vmem_to_hbm [thread:$0]  %s151, 128, %s4, [#allocation10]
    $region37: #{tpu_custom_call.1} parent=1 // pred_fallthru
      _
    // Predicated region
    $region38: #{tpu_custom_call.1} parent=1 // pred_check
      _
    $region39: #{tpu_custom_call.1} parent=1 // pred_check_branch
      %155 = sbr.rel (0) target = $region41
    $region40: #{tpu_custom_call.1} parent=1 // pred_region
      %156 = dma.done [#allocation5], 128
    $region41: #{tpu_custom_call.1} parent=1 // pred_fallthru
      _
    // Predicated region
    $region42: #{tpu_custom_call.1} parent=1 // pred_check
      _
    $region43: #{tpu_custom_call.1} parent=1 // pred_check_branch
      %158 = sbr.rel (0) target = $region45
    $region44: #{tpu_custom_call.1} parent=1 // pred_region
      %159 = dma.done [#allocation10], 128
    $region45: #{tpu_custom_call.1} parent=1 // pred_fallthru
      _
    %160 = vsyncpa [#allocation4], 1
    %161 = vsyncpa [#allocation7], 1
    %162 = vsyncpa [#allocation5], 1
    %163 = vsyncpa [#allocation10], 1

// kernel: tpu_custom_call.1
$region0: #{tpu_custom_call.1}
  #allocation0 [shape = 'u32[]', space=smem, size = 0x4, offset = 0x4, fixed_abs, tag = 'smem constant byte address 0x4 - core index']
  #allocation1 [shape = 'u32[144,128]{1,0:T(1,128)}', space=vmem, size = 0x12000, scoped, tag = 'internal scratch']
  #allocation2 [shape = 'f32[8,64]{1,0:T(8,128)}', space=vmem, size = 0x1000, scoped, tag = 'scratch operand']
  %s0 = inlined_call_operand.hbm [shape: bf16[8,32], index: 0, kind: input, shape index: {}]
  %s1 = inlined_call_operand.hbm [shape: bf16[32,64], index: 1, kind: input, shape index: {}]
  %s2 = inlined_call_operand.vmem [shape: f32[1,64], index: 2, kind: input, shape index: {}]
  %s3 = inlined_call_operand.hbm [shape: f32[8,32], index: 3, kind: output, shape index: {0}]
  %s4 = inlined_call_operand.hbm [shape: f32[8,32], index: 4, kind: output, shape index: {1}]
  %5 = xla_tuple %s3, %s4
  %s6 = sld [smem:[#allocation0]]
  $region46: #{tpu_custom_call.1} parent=0
    _
  %s8 = ssub.s32 1, %s6
  %s9 = scalar_select 0, %s8, %s6
  $region1: #{tpu_custom_call.1} parent=0
    #allocation3 [shape = 'u8[2048]{0}', space=vmem, size = 0x800, scoped, tag = 'input window, operand 0, single buffered']
    #allocation4 [shape = 's32[1]{0}', space=sflag, size = 0x4, scoped, tag = 'scoped memory for tpu_custom_call.1']
    #allocation5 [shape = 's32[1]{0}', space=sflag, size = 0x4, scoped, tag = 'scoped memory for tpu_custom_call.1']
    #allocation6 [shape = 'u8[8192]{0}', space=vmem, size = 0x2000, scoped, tag = 'input window, operand 1, single buffered']
    #allocation7 [shape = 's32[1]{0}', space=sflag, size = 0x4, scoped, tag = 'scoped memory for tpu_custom_call.1']
    #allocation8 [shape = 'u8[4096]{0}', space=vmem, size = 0x1000, scoped, tag = 'output window, operand 0, single buffered']
    #allocation9 [shape = 'u8[4096]{0}', space=vmem, size = 0x1000, scoped, tag = 'output window, operand 1, single buffered']
    #allocation10 [shape = 's32[1]{0}', space=sflag, size = 0x4, scoped, tag = 'scoped memory for tpu_custom_call.1']
    %10 = vsyncpa [#allocation4], 0
    %11 = vsyncpa [#allocation7], 0
    %12 = vsyncpa [#allocation5], 0
    %13 = vsyncpa [#allocation10], 0
    // Predicated region
    $region2: #{tpu_custom_call.1} parent=1 // pred_check
      _
    $region3: #{tpu_custom_call.1} parent=1 // pred_check_branch
      %15 = sbr.rel (0) target = $region5
    $region4: #{tpu_custom_call.1} parent=1 // pred_region
      %s17 = ssub.s32 64, 64
      %18 = vsyncadd [#allocation4], %s17
      %s20 = sshll.u32 [#allocation3], 4
      %s21 = int_to_ptr.vmem [resolvable:$true] %s20
      %23 = dma.hbm_to_vmem [thread:$0]  %s0, 64, %s21, [#allocation4]
    $region5: #{tpu_custom_call.1} parent=1 // pred_fallthru
      _
    // Predicated region
    $region6: #{tpu_custom_call.1} parent=1 // pred_check
      _
    $region7: #{tpu_custom_call.1} parent=1 // pred_check_branch
      %25 = sbr.rel (0) target = $region9
    $region8: #{tpu_custom_call.1} parent=1 // pred_region
      %s27 = ssub.s32 256, 256
      %28 = vsyncadd [#allocation7], %s27
      %s29 = sshll.u32 [#allocation6], 4
      %s30 = int_to_ptr.vmem [resolvable:$true] %s29
      %35 = dma.hbm_to_vmem [thread:$0]  %s1, 256, %s30, [#allocation7], 64, 64, 4
    $region9: #{tpu_custom_call.1} parent=1 // pred_fallthru
      _
    // Predicated region
    $region10: #{tpu_custom_call.1} parent=1 // pred_check
      _
    $region11: #{tpu_custom_call.1} parent=1 // pred_check_branch
      %37 = sbr.rel (0) target = $region13
    $region12: #{tpu_custom_call.1} parent=1 // pred_region
      _
    $region13: #{tpu_custom_call.1} parent=1 // pred_fallthru
      _
    // Predicated region
    $region14: #{tpu_custom_call.1} parent=1 // pred_check
      _
    $region15: #{tpu_custom_call.1} parent=1 // pred_check_branch
      %39 = sbr.rel (0) target = $region17
    $region16: #{tpu_custom_call.1} parent=1 // pred_region
      %40 = dma.done [#allocation4], 64
    $region17: #{tpu_custom_call.1} parent=1 // pred_fallthru
      _
    // Predicated region
    $region18: #{tpu_custom_call.1} parent=1 // pred_check
      _
    $region19: #{tpu_custom_call.1} parent=1 // pred_check_branch
      %42 = sbr.rel (0) target = $region21
    $region20: #{tpu_custom_call.1} parent=1 // pred_region
      %43 = dma.done [#allocation7], 256
    $region21: #{tpu_custom_call.1} parent=1 // pred_fallthru
      _
    %p45 = scmp.eq.s32.totalorder 0, 0
    // Predicated region
    $region22: #{tpu_custom_call.1} parent=1 // pred_check
      %p46 = pneg %p45
    $region23: #{tpu_custom_call.1} parent=1 // pred_check_branch
      %48 = sbr.rel (%p46) target = $region25
    $region24: #{tpu_custom_call.1} parent=1 // pred_region
      %vm49 = vcmask 523264
      %50 = vst.msk [vmem:[#allocation2] sm:$0xff] %vm49, 0.0
    $region25: #{tpu_custom_call.1} parent=1 // pred_fallthru
      _
    %v51 = vld [vmem:[#allocation2] sm:$0xff]
    %v52 = vld [vmem:[#allocation3] sm:$0xf]
    %v53 = vld [vmem:[#allocation6] sm:$0xf]
    %v54 = vld [vmem:[#allocation6 + $0x4] sm:$0xf]
    %v55 = vld [vmem:[#allocation6 + $0x8] sm:$0xf]
    %v56 = vld [vmem:[#allocation6 + $0xc] sm:$0xf]
    %v61 = vunpack.c.l.b16 %v53
    %v62 = vunpack.c.l.b16 %v54
    %v63 = vunpack.c.l.b16 %v55
    %v64 = vunpack.c.l.b16 %v56
    %v65 = vpack.c.b16 %v62, %v61
    %v66 = vpack.c.b16 %v64, %v63
    %vm69 = vcmask 261120
    %v71 = vsel %vm69, %v52, 0
    %73 = vmatprep.subr.bf16.mxu0 0
    %74 = vmatpush1.bf16.msra.mxu0 %v65
    %75 = vmatprep.subr.bf16.mxu0 0
    %76 = vmatpush1.bf16.msra.mxu0 %v66
    %77 = vmatprep.subr.bf16.mxu0 0
    %78 = vmatpush1.bf16.msra.mxu0 0
    %79 = vmatprep.subr.bf16.mxu0 0
    %80 = vmatpush1.bf16.msra.mxu0 0
    %81 = vmatprep.subr.bf16.mxu0 0
    %82 = vmatpush1.bf16.msra.mxu0 0
    %83 = vmatprep.subr.bf16.mxu0 0
    %84 = vmatpush1.bf16.msra.mxu0 0
    %85 = vmatprep.subr.bf16.mxu0 0
    %86 = vmatpush1.bf16.msra.mxu0 0
    %87 = vmatprep.subr.bf16.mxu0 0
    %88 = vmatpush1.bf16.msra.mxu0 0
    %89 = vmatprep.subr.bf16.mxu0 0
    %90 = vmatpush1.bf16.msra.mxu0 0
    %91 = vmatprep.subr.bf16.mxu0 0
    %92 = vmatpush1.bf16.msra.mxu0 0
    %93 = vmatprep.subr.bf16.mxu0 0
    %94 = vmatpush1.bf16.msra.mxu0 0
    %95 = vmatprep.subr.bf16.mxu0 0
    %96 = vmatpush1.bf16.msra.mxu0 0
    %97 = vmatprep.subr.bf16.mxu0 0
    %98 = vmatpush1.bf16.msra.mxu0 0
    %99 = vmatprep.subr.bf16.mxu0 0
    %100 = vmatpush1.bf16.msra.mxu0 0
    %101 = vmatprep.subr.bf16.mxu0 0
    %102 = vmatpush1.bf16.msra.mxu0 0
    %103 = vmatprep.subr.bf16.mxu0 0
    %104 = vmatpush1.bf16.msra.mxu0 0
    %105 = vmatprep.mubr.bf16.mxu0 0
    %106 = vmatmul.mubr.bf16.gmra.mrb[0].mxu0 %v71
    %v107 = vpop.f32.mrb[0].mxu0
    %v108 = vadd.f32 0.0, %v107
    %v109 = vpop.f32.mrb[0].mxu0
    %v110 = vpop.f32.mrb[0].mxu0
    %v111 = vpop.f32.mrb[0].mxu0
    %112 = vdwg.mxu0
    %v113 = vadd.f32 %v51, %v108
    %vm114 = vcmask 523264
    %115 = vst.msk [vmem:[#allocation2] sm:$0xff] %vm114, %v113
    // Predicated region
    $region26: #{tpu_custom_call.1} parent=1 // pred_check
      %p116 = pneg %p45
    $region27: #{tpu_custom_call.1} parent=1 // pred_check_branch
      %118 = sbr.rel (%p116) target = $region29
    $region28: #{tpu_custom_call.1} parent=1 // pred_region
      %v119 = vld [vmem:[#allocation2] sm:$0xff]
      %v120 = vld [vmem:[%s2] sm:$0x1]
      %v122 = vlaneseq
      %v123 = vshrl.u32 %v122, 7
      %v124 = vsub.s32 0, %v123
      %v125 = vrot.slane %v120, %v124
      %v127 = vadd.f32 %v119, %v125
      %128 = vst.msk [vmem:[#allocation8] sm:$0xff] %vm69, %v127
      %130 = vrot.lane.b32.xlu0 %v127, 96
      %v131 = vpop.permute.xlu0 %130
      %133 = vst.msk [vmem:[#allocation9] sm:$0xff] %vm69, %v131
    $region29: #{tpu_custom_call.1} parent=1 // pred_fallthru
      _
    // Predicated region
    $region30: #{tpu_custom_call.1} parent=1 // pred_check
      _
    $region31: #{tpu_custom_call.1} parent=1 // pred_check_branch
      %135 = sbr.rel (0) target = $region33
    $region32: #{tpu_custom_call.1} parent=1 // pred_region
      %s137 = ssub.s32 128, 128
      %138 = vsyncadd [#allocation5], %s137
      %s140 = sshll.u32 [#allocation8], 4
      %s141 = int_to_ptr.vmem [resolvable:$true] %s140
      %143 = dma.vmem_to_hbm [thread:$0]  %s141, 128, %s3, [#allocation5]
    $region33: #{tpu_custom_call.1} parent=1 // pred_fallthru
      _
    // Predicated region
    $region34: #{tpu_custom_call.1} parent=1 // pred_check
      _
    $region35: #{tpu_custom_call.1} parent=1 // pred_check_branch
      %145 = sbr.rel (0) target = $region37
    $region36: #{tpu_custom_call.1} parent=1 // pred_region
      %s147 = ssub.s32 128, 128
      %148 = vsyncadd [#allocation10], %s147
      %s150 = sshll.u32 [#allocation9], 4
      %s151 = int_to_ptr.vmem [resolvable:$true] %s150
      %153 = dma.vmem_to_hbm [thread:$0]  %s151, 128, %s4, [#allocation10]
    $region37: #{tpu_custom_call.1} parent=1 // pred_fallthru
      _
    // Predicated region
    $region38: #{tpu_custom_call.1} parent=1 // pred_check
      _
    $region39: #{tpu_custom_call.1} parent=1 // pred_check_branch
      %155 = sbr.rel (0) target = $region41
    $region40: #{tpu_custom_call.1} parent=1 // pred_region
      %156 = dma.done [#allocation5], 128
    $region41: #{tpu_custom_call.1} parent=1 // pred_fallthru
      _
    // Predicated region
    $region42: #{tpu_custom_call.1} parent=1 // pred_check
      _
    $region43: #{tpu_custom_call.1} parent=1 // pred_check_branch
      %158 = sbr.rel (0) target = $region45
    $region44: #{tpu_custom_call.1} parent=1 // pred_region
      %159 = dma.done [#allocation10], 128
    $region45: #{tpu_custom_call.1} parent=1 // pred_fallthru
      _
    %160 = vsyncpa [#allocation4], 1
    %161 = vsyncpa [#allocation7], 1
    %162 = vsyncpa [#allocation5], 1
    %163 = vsyncpa [#allocation10], 1

</llo_original>
